<compile_context>
chip_gen: v7x
topology: tpu7x:2x2x1
jax: 0.10.0
libtpu: 0.0.40
codegen_flags: <defaults>
</compile_context>

<pallas_src>
import functools

import jax
import jax.numpy as jnp
from jax.experimental import pallas as pl
from jax.experimental.pallas import tpu as pltpu


def _round_up(x, m):
    return ((x + m - 1) // m) * m


def _vmem_budget_bytes():
    """Generation-aware VMEM budget (leaves compiler-scratch headroom)."""
    cap = None
    try:
        cap = int(pltpu.get_tpu_info().vmem_capacity_bytes)
    except Exception:
        cap = None
    if not cap or cap <= 0:
        cap = 64 * 2**20  # conservative (v7x-sized) default
    # ~51 MiB on a 64 MiB part (v7x), ~102 MiB on 128 MiB parts (v5e/v6e).
    return max(16 * 2**20, min(int(cap * 0.80), cap - 8 * 2**20))


# --------------------------------------------------------------------------- #
# Kernel: one (tile_b, tile_n) output tile
# --------------------------------------------------------------------------- #
def gru_cell_kernel(x_ref, h_ref, wx_ref, wh_ref, bx_ref, bh_ref, o_ref, *, tile_n):
    """
    x_ref  : (tile_b, ni_p)          input block, native (weight) dtype
    h_ref  : (tile_b, nh_p)          hidden block (full nh_p -> also used for blend)
    wx_ref : (ni_p, 3*tile_n)        i2h weights for this N-tile, columns [r|u|n]
    wh_ref : (nh_p, 3*tile_n)        h2h weights for this N-tile, columns [r|u|n]
    bx_ref : (1, 3*tile_n)           i2h bias  (f32)
    bh_ref : (1, 3*tile_n)           h2h bias  (f32)
    o_ref  : (tile_b, tile_n)        new hidden state tile
    """
    t = tile_n
    gx = jnp.dot(x_ref[...], wx_ref[...],
                 preferred_element_type=jnp.float32) + bx_ref[...]
    gh = jnp.dot(h_ref[...], wh_ref[...],
                 preferred_element_type=jnp.float32) + bh_ref[...]

    # One sigmoid dispatch over the fused r|u slab (EUP; hidden under MXU/DMA).
    ru = jax.nn.sigmoid(gx[:, :2 * t] + gh[:, :2 * t])
    resetgate = ru[:, :t]
    updategate = ru[:, t:]
    newgate = jnp.tanh(gx[:, 2 * t:] + resetgate * gh[:, 2 * t:])

    # h slice for the blend comes from the already-resident h block (no 2nd DMA).
    off = pl.multiple_of(pl.program_id(0) * t, 128)
    h_blend = h_ref[:, pl.ds(off, t)].astype(jnp.float32)

    # u*h + (1-u)*n  ==  n + u*(h - n)
    o_ref[...] = (newgate + updategate * (h_blend - newgate)).astype(o_ref.dtype)


# --------------------------------------------------------------------------- #
# One-time parameter preparation (hoisted out of the per-call hot path)
# --------------------------------------------------------------------------- #
def prepare_gru_params(w_ih, b_ih, w_hh, b_hh, *, weight_dtype=None,
                       vmem_budget_bytes=None, max_tile_b=256):
    """PyTorch-style GRUCell params -> kernel-friendly layout.

    w_ih: [3*nh, ni], b_ih: [3*nh], w_hh: [3*nh, nh], b_hh: [3*nh]
    Gate order along 3*nh is [r | u | n] (torch.chunk(3, 1) order).
    weight_dtype: optional narrower storage dtype (e.g. jnp.bfloat16) for the
    bandwidth-bound regime; None keeps the original dtype.
    """
    three_nh, ni = w_ih.shape
    nh = three_nh // 3
    w_dtype = jnp.dtype(weight_dtype) if weight_dtype is not None else jnp.dtype(w_ih.dtype)

    ni_p = _round_up(ni, 128)
    nh_p = _round_up(nh, 128)
    itemsize = w_dtype.itemsize

    if vmem_budget_bytes is None:
        vmem_budget_bytes = _vmem_budget_bytes()

    def est(tn, tb):
        per_step = ((ni_p + nh_p) * 3 * tn * itemsize       # wx + wh blocks
                    + tb * (ni_p + nh_p) * itemsize          # x + h blocks
                    + 2 * 3 * tn * 4                         # biases (f32)
                    + tb * tn * 4)                           # output block
        interm = 3 * tb * 3 * tn * 4                         # gx / gh / ru f32 temps
        return 2 * per_step + interm                         # double-buffered

    # Largest lane-aligned divisor of nh_p that fits the budget (prefers a
    # single N tile; >=256 lanes fills the 256-wide v6e/v7x MXU).
    candidates = [d for d in range(nh_p, 127, -128) if nh_p % d == 0]
    tile_n = 128
    for d in candidates:
        if est(d, max_tile_b) <= vmem_budget_bytes:
            tile_n = d
            break
    n_tiles = nh_p // tile_n

    def split3(a):
        return a[:nh], a[nh:2 * nh], a[2 * nh:]

    wi_r, wi_u, wi_n = split3(w_ih)
    wh_r, wh_u, wh_n = split3(w_hh)
    bi_r, bi_u, bi_n = split3(b_ih)
    bh_r, bh_u, bh_n = split3(b_hh)

    def pad_t(w_g, rows, rows_p):
        # [nh, rows] -> transposed + zero-padded [rows_p, nh_p]
        out = jnp.zeros((rows_p, nh_p), w_dtype)
        return out.at[:rows, :nh].set(w_g.T.astype(w_dtype))

    def interleave_w(gates, rows_p):
        # per N-tile column layout: [r_t | u_t | n_t] so each grid tile reads
        # one contiguous, lane-dense (rows_p, 3*tile_n) weight slab.
        return jnp.stack([g.reshape(rows_p, n_tiles, tile_n) for g in gates],
                         axis=2).reshape(rows_p, 3 * nh_p)

    wx = interleave_w([pad_t(g, ni, ni_p) for g in (wi_r, wi_u, wi_n)], ni_p)
    wh = interleave_w([pad_t(g, nh, nh_p) for g in (wh_r, wh_u, wh_n)], nh_p)

    def pad_b(b_g):
        return jnp.zeros((nh_p,), jnp.float32).at[:nh].set(b_g.astype(jnp.float32))

    def interleave_b(gates):
        return jnp.stack([g.reshape(n_tiles, tile_n) for g in gates],
                         axis=1).reshape(1, 3 * nh_p)

    bx = interleave_b([pad_b(g) for g in (bi_r, bi_u, bi_n)])
    bh = interleave_b([pad_b(g) for g in (bh_r, bh_u, bh_n)])

    params = (wx, wh, bx, bh)
    meta = dict(ni=ni, nh=nh, ni_p=ni_p, nh_p=nh_p, tile_n=tile_n,
                w_dtype=w_dtype, max_tile_b=max_tile_b)
    return params, meta


# --------------------------------------------------------------------------- #
# Forward call
# --------------------------------------------------------------------------- #
def gru_cell(x, h, params, meta, *, max_tile_b=None):
    """x: [B, ni], h: [B, nh]  ->  new hidden state [B, nh]."""
    wx, wh, bx, bh = params
    ni, nh = meta["ni"], meta["nh"]
    ni_p, nh_p, tile_n = meta["ni_p"], meta["nh_p"], meta["tile_n"]
    w_dtype = meta["w_dtype"]
    if max_tile_b is None:
        max_tile_b = meta["max_tile_b"]

    B = x.shape[0]
    tile_b = min(_round_up(B, 16), max_tile_b)   # sublane-packed even for bf16
    b_p = _round_up(B, tile_b)

    out_dtype = jnp.result_type(x.dtype, h.dtype)

    # Fast path: no pad materialization when shapes are already lane/tile aligned.
    x_in = x.astype(w_dtype)
    if (b_p != B) or (ni_p != ni):
        x_in = jnp.pad(x_in, ((0, b_p - B), (0, ni_p - ni)))
    h_in = h.astype(w_dtype)
    if (b_p != B) or (nh_p != nh):
        h_in = jnp.pad(h_in, ((0, b_p - B), (0, nh_p - nh)))

    n_tiles = nh_p // tile_n
    m_tiles = b_p // tile_b

    kernel = functools.partial(gru_cell_kernel, tile_n=tile_n)

    out_p = pl.pallas_call(
        kernel,
        out_shape=jax.ShapeDtypeStruct((b_p, nh_p), out_dtype),
        # Batch axis innermost: weight/bias blocks keep the same block index
        # across consecutive steps -> they stay VMEM-resident per N-tile.
        grid=(n_tiles, m_tiles),
        in_specs=[
            pl.BlockSpec((tile_b, ni_p), lambda j, i: (i, 0)),       # x
            pl.BlockSpec((tile_b, nh_p), lambda j, i: (i, 0)),       # h
            pl.BlockSpec((ni_p, 3 * tile_n), lambda j, i: (0, j)),   # wx [r|u|n]
            pl.BlockSpec((nh_p, 3 * tile_n), lambda j, i: (0, j)),   # wh [r|u|n]
            pl.BlockSpec((1, 3 * tile_n), lambda j, i: (0, j)),      # bx
            pl.BlockSpec((1, 3 * tile_n), lambda j, i: (0, j)),      # bh
        ],
        out_specs=pl.BlockSpec((tile_b, tile_n), lambda j, i: (i, j)),
        compiler_params=pltpu.CompilerParams(
            # N axis parallel (shards weights across v7x's 2 TCs), batch sequential.
            dimension_semantics=("parallel", "arbitrary"),
            vmem_limit_bytes=_vmem_budget_bytes(),
        ),
    )(x_in, h_in, wx, wh, bx, bh)

    return out_p[:B, :nh]


# --------------------------------------------------------------------------- #
# Pure-JAX reference (mirrors the PyTorch forward exactly)
# --------------------------------------------------------------------------- #
def gru_cell_ref(x, h, w_ih, b_ih, w_hh, b_hh):
    gate_x = x @ w_ih.T + b_ih
    gate_h = h @ w_hh.T + b_hh
    nh = h.shape[-1]
    i_r, i_u, i_n = gate_x[:, :nh], gate_x[:, nh:2 * nh], gate_x[:, 2 * nh:]
    h_r, h_u, h_n = gate_h[:, :nh], gate_h[:, nh:2 * nh], gate_h[:, 2 * nh:]
    resetgate = jax.nn.sigmoid(i_r + h_r)
    updategate = jax.nn.sigmoid(i_u + h_u)
    newgate = jnp.tanh(i_n + resetgate * h_n)
    return updategate * h + (1 - updategate) * newgate


# --------------------------------------------------------------------------- #
# Demo / self-test
# --------------------------------------------------------------------------- #
def _make_params(key, ni, nh):
    k_wi, k_bi, k_wh, k_bh = jax.random.split(key, 4)
    bound_i = 1.0 / (ni ** 0.5)
    bound_h = 1.0 / (nh ** 0.5)
    w_ih = jax.random.uniform(k_wi, (3 * nh, ni), jnp.float32, -bound_i, bound_i)
    b_ih = jax.random.uniform(k_bi, (3 * nh,), jnp.float32, -bound_i, bound_i)
    w_hh = jax.random.uniform(k_wh, (3 * nh, nh), jnp.float32, -bound_h, bound_h)
    b_hh = jax.random.uniform(k_bh, (3 * nh,), jnp.float32, -bound_h, bound_h)
    return w_ih, b_ih, w_hh, b_hh


def _run_case(key, B, ni, nh, *, atol, rtol, max_tile_b=None, **prep_kwargs):
    k_p, k_x, k_h = jax.random.split(key, 3)
    w_ih, b_ih, w_hh, b_hh = _make_params(k_p, ni, nh)
    x = jax.random.normal(k_x, (B, ni), jnp.float32)
    h = jax.random.normal(k_h, (B, nh), jnp.float32)

    params, meta = prepare_gru_params(w_ih, b_ih, w_hh, b_hh, **prep_kwargs)
    out = jax.block_until_ready(gru_cell(x, h, params, meta, max_tile_b=max_tile_b))
    ref = jax.block_until_ready(gru_cell_ref(x, h, w_ih, b_ih, w_hh, b_hh))

    assert out.shape == (B, nh), out.shape
    err = float(jnp.max(jnp.abs(out - ref)))
    assert jnp.allclose(out, ref, atol=atol, rtol=rtol), err


if __name__ == "__main__":
    key = jax.random.PRNGKey(0)
    k1, k2, k3 = jax.random.split(key, 3)

    # Case 1: small/odd shapes -> batch + lane padding, single N tile, f32 weights.
    _run_case(k1, B=10, ni=24, nh=40, atol=1e-4, rtol=1e-4)

    # Case 2: force the multi-tile path (tiny budget -> tile_n=128 -> 2 N tiles;
    # max_tile_b=64 -> 3 batch tiles) to validate the interleaved r|u|n layout,
    # the batch-innermost weight-resident grid, and the dynamic h-blend slice.
    _run_case(k2, B=136, ni=48, nh=160, atol=1e-4, rtol=1e-4,
              max_tile_b=64, vmem_budget_bytes=1)

    # Case 3: bf16 weight/activation path (bandwidth-optimized), f32 accumulation.
    _run_case(k3, B=32, ni=64, nh=128, atol=7.5e-2, rtol=1e-2,
              weight_dtype=jnp.bfloat16)

    print("KERNEL_OK")
</pallas_src>

<mosaic_0001>
module attributes {stable_mosaic.version = 11 : i64} {
  func.func @gru_cell_kernel(%arg0: i32, %arg1: i32, %arg2: memref<16x128xf32, #tpu.memory_space<vmem>>, %arg3: memref<16x128xf32, #tpu.memory_space<vmem>>, %arg4: memref<128x384xf32, #tpu.memory_space<vmem>>, %arg5: memref<128x384xf32, #tpu.memory_space<vmem>>, %arg6: memref<1x384xf32, #tpu.memory_space<vmem>>, %arg7: memref<1x384xf32, #tpu.memory_space<vmem>>, %arg8: memref<16x128xf32, #tpu.memory_space<vmem>>) attributes {dimension_semantics = [#tpu.dimension_semantics<parallel>, #tpu.dimension_semantics<arbitrary>], iteration_bounds = array<i64: 1, 1>, scalar_prefetch = 0 : i64, scratch_operands = 0 : i64, tpu.core_type = #tpu.core_type<tc>, window_params = [{transform_indices = @transform_0, window_bounds = array<i64: 16, 128>}, {transform_indices = @transform_1, window_bounds = array<i64: 16, 128>}, {transform_indices = @transform_2, window_bounds = array<i64: 128, 384>}, {transform_indices = @transform_3, window_bounds = array<i64: 128, 384>}, {transform_indices = @transform_4, window_bounds = array<i64: 1, 384>}, {transform_indices = @transform_5, window_bounds = array<i64: 1, 384>}, {transform_indices = @transform_6, window_bounds = array<i64: 16, 128>}]} {
    %c0 = arith.constant 0 : index
    %c0_0 = arith.constant 0 : index
    %0 = vector.load %arg2[%c0, %c0_0] : memref<16x128xf32, #tpu.memory_space<vmem>>, vector<16x128xf32>
    %c0_1 = arith.constant 0 : index
    %c0_2 = arith.constant 0 : index
    %1 = vector.load %arg4[%c0_1, %c0_2] : memref<128x384xf32, #tpu.memory_space<vmem>>, vector<128x384xf32>
    %cst = arith.constant dense<0.000000e+00> : vector<16x384xf32>
    %2 = tpu.matmul %0, %1, %cst {dimension_numbers = #tpu.dot_dimension_numbers<[1], [0], [0], [1], [0, 0, 1, 1], [], []>} : vector<16x128xf32>, vector<128x384xf32>, vector<16x384xf32> -> vector<16x384xf32>
    %c0_3 = arith.constant 0 : index
    %c0_4 = arith.constant 0 : index
    %3 = vector.load %arg6[%c0_3, %c0_4] : memref<1x384xf32, #tpu.memory_space<vmem>>, vector<1x384xf32>
    %4 = vector.broadcast %3 : vector<1x384xf32> to vector<16x384xf32>
    %5 = arith.addf %2, %4 : vector<16x384xf32>
    %c0_5 = arith.constant 0 : index
    %c0_6 = arith.constant 0 : index
    %6 = vector.load %arg3[%c0_5, %c0_6] : memref<16x128xf32, #tpu.memory_space<vmem>>, vector<16x128xf32>
    %c0_7 = arith.constant 0 : index
    %c0_8 = arith.constant 0 : index
    %7 = vector.load %arg5[%c0_7, %c0_8] : memref<128x384xf32, #tpu.memory_space<vmem>>, vector<128x384xf32>
    %cst_9 = arith.constant dense<0.000000e+00> : vector<16x384xf32>
    %8 = tpu.matmul %6, %7, %cst_9 {dimension_numbers = #tpu.dot_dimension_numbers<[1], [0], [0], [1], [0, 0, 1, 1], [], []>} : vector<16x128xf32>, vector<128x384xf32>, vector<16x384xf32> -> vector<16x384xf32>
    %c0_10 = arith.constant 0 : index
    %c0_11 = arith.constant 0 : index
    %9 = vector.load %arg7[%c0_10, %c0_11] : memref<1x384xf32, #tpu.memory_space<vmem>>, vector<1x384xf32>
    %10 = vector.broadcast %9 : vector<1x384xf32> to vector<16x384xf32>
    %11 = arith.addf %8, %10 : vector<16x384xf32>
    %12 = vector.extract_strided_slice %5 {offsets = [0, 0], sizes = [16, 256], strides = [1, 1]} : vector<16x384xf32> to vector<16x256xf32>
    %13 = vector.extract_strided_slice %11 {offsets = [0, 0], sizes = [16, 256], strides = [1, 1]} : vector<16x384xf32> to vector<16x256xf32>
    %14 = arith.addf %12, %13 : vector<16x256xf32>
    %15 = arith.negf %14 : vector<16x256xf32>
    %16 = math.exp %15 : vector<16x256xf32>
    %cst_12 = arith.constant 1.000000e+00 : f32
    %17 = vector.broadcast %cst_12 : f32 to vector<16x256xf32>
    %18 = arith.addf %17, %16 : vector<16x256xf32>
    %19 = arith.divf %17, %18 : vector<16x256xf32>
    %20 = vector.extract_strided_slice %19 {offsets = [0, 0], sizes = [16, 128], strides = [1, 1]} : vector<16x256xf32> to vector<16x128xf32>
    %21 = vector.extract_strided_slice %19 {offsets = [0, 128], sizes = [16, 128], strides = [1, 1]} : vector<16x256xf32> to vector<16x128xf32>
    %22 = vector.extract_strided_slice %5 {offsets = [0, 256], sizes = [16, 128], strides = [1, 1]} : vector<16x384xf32> to vector<16x128xf32>
    %23 = vector.extract_strided_slice %11 {offsets = [0, 256], sizes = [16, 128], strides = [1, 1]} : vector<16x384xf32> to vector<16x128xf32>
    %24 = arith.mulf %20, %23 : vector<16x128xf32>
    %25 = arith.addf %22, %24 : vector<16x128xf32>
    %26 = math.tanh %25 : vector<16x128xf32>
    %c128_i32 = arith.constant 128 : i32
    %27 = arith.muli %arg0, %c128_i32 : i32
    %28 = tpu.assume_multiple %27, 128 : i32
    %c0_13 = arith.constant 0 : index
    %29 = arith.index_cast %28 : i32 to index
    %30 = vector.load %arg3[%c0_13, %29] : memref<16x128xf32, #tpu.memory_space<vmem>>, vector<16x128xf32>
    %31 = arith.subf %30, %26 : vector<16x128xf32>
    %32 = arith.mulf %21, %31 : vector<16x128xf32>
    %33 = arith.addf %26, %32 : vector<16x128xf32>
    %c0_14 = arith.constant 0 : index
    %c0_15 = arith.constant 0 : index
    %34 = vector.load %arg8[%c0_14, %c0_15] : memref<16x128xf32, #tpu.memory_space<vmem>>, vector<16x128xf32>
    tpu.vector_store %arg8[%c0_14, %c0_15], %33 {strides = array<i32>} : memref<16x128xf32, #tpu.memory_space<vmem>>, vector<16x128xf32>,
    return
  }
  func.func @transform_0(%arg0: i32, %arg1: i32) -> (i32, i32) {
    %c0_i32 = arith.constant 0 : i32
    %c0_i32_0 = arith.constant 0 : i32
    return %arg1, %c0_i32 : i32, i32
  }
  func.func @transform_1(%arg0: i32, %arg1: i32) -> (i32, i32) {
    %c0_i32 = arith.constant 0 : i32
    %c0_i32_0 = arith.constant 0 : i32
    return %arg1, %c0_i32 : i32, i32
  }
  func.func @transform_2(%arg0: i32, %arg1: i32) -> (i32, i32) {
    %c0_i32 = arith.constant 0 : i32
    %c0_i32_0 = arith.constant 0 : i32
    return %c0_i32, %arg0 : i32, i32
  }
  func.func @transform_3(%arg0: i32, %arg1: i32) -> (i32, i32) {
    %c0_i32 = arith.constant 0 : i32
    %c0_i32_0 = arith.constant 0 : i32
    return %c0_i32, %arg0 : i32, i32
  }
  func.func @transform_4(%arg0: i32, %arg1: i32) -> (i32, i32) {
    %c0_i32 = arith.constant 0 : i32
    %c0_i32_0 = arith.constant 0 : i32
    return %c0_i32, %arg0 : i32, i32
  }
  func.func @transform_5(%arg0: i32, %arg1: i32) -> (i32, i32) {
    %c0_i32 = arith.constant 0 : i32
    %c0_i32_0 = arith.constant 0 : i32
    return %c0_i32, %arg0 : i32, i32
  }
  func.func @transform_6(%arg0: i32, %arg1: i32) -> (i32, i32) {
    %c0_i32 = arith.constant 0 : i32
    return %arg1, %arg0 : i32, i32
  }
}

</mosaic_0001>

<llo_original>
// kernel: tpu_custom_call.1
$region0: #{tpu_custom_call.1}
  #allocation0 [shape = 'u32[]', space=smem, size = 0x4, offset = 0x4, fixed_abs, tag = 'smem constant byte address 0x4 - core index']
  #allocation1 [shape = 'u32[144,128]{1,0:T(1,128)}', space=vmem, size = 0x12000, scoped, tag = 'internal scratch']
  %s0 = inlined_call_operand.hbm [shape: f32[16,128], index: 0, kind: input, shape index: {}]
  %s1 = inlined_call_operand.hbm [shape: f32[16,128], index: 1, kind: input, shape index: {}]
  %s2 = inlined_call_operand.hbm [shape: f32[128,384], index: 2, kind: input, shape index: {}]
  %s3 = inlined_call_operand.hbm [shape: f32[128,384], index: 3, kind: input, shape index: {}]
  %s4 = inlined_call_operand.vmem [shape: f32[1,384], index: 4, kind: input, shape index: {}]
  %s5 = inlined_call_operand.vmem [shape: f32[1,384], index: 5, kind: input, shape index: {}]
  %s6 = inlined_call_operand.hbm [shape: f32[16,128], index: 6, kind: output, shape index: {}]
  %s7 = sld [smem:[#allocation0]]
  $region50: #{tpu_custom_call.1} parent=0
    _
  %s9 = ssub.s32 1, %s7
  %s10 = scalar_select 0, %s9, %s7
  $region1: #{tpu_custom_call.1} parent=0
    #allocation2 [shape = 'u8[8192]{0}', space=vmem, size = 0x2000, scoped, tag = 'input window, operand 0, single buffered']
    #allocation3 [shape = 's32[1]{0}', space=sflag, size = 0x4, scoped, tag = 'scoped memory for tpu_custom_call.1']
    #allocation4 [shape = 's32[1]{0}', space=sflag, size = 0x4, scoped, tag = 'scoped memory for tpu_custom_call.1']
    #allocation5 [shape = 'u8[8192]{0}', space=vmem, size = 0x2000, scoped, tag = 'input window, operand 1, single buffered']
    #allocation6 [shape = 's32[1]{0}', space=sflag, size = 0x4, scoped, tag = 'scoped memory for tpu_custom_call.1']
    #allocation7 [shape = 'u8[196608]{0}', space=vmem, size = 0x30000, scoped, tag = 'input window, operand 2, single buffered']
    #allocation8 [shape = 'u8[196608]{0}', space=vmem, size = 0x30000, scoped, tag = 'input window, operand 3, single buffered']
    #allocation9 [shape = 's32[1]{0}', space=sflag, size = 0x4, scoped, tag = 'scoped memory for tpu_custom_call.1']
    #allocation10 [shape = 'u8[8192]{0}', space=vmem, size = 0x2000, scoped, tag = 'output window, operand 0, single buffered']
    %11 = vsyncpa [#allocation3], 0
    %12 = vsyncpa [#allocation6], 0
    %13 = vsyncpa [#allocation9], 0
    %14 = vsyncpa [#allocation4], 0
    // Predicated region
    $region2: #{tpu_custom_call.1} parent=1 // pred_check
      _
    $region3: #{tpu_custom_call.1} parent=1 // pred_check_branch
      %16 = sbr.rel (0) target = $region5
    $region4: #{tpu_custom_call.1} parent=1 // pred_region
      %s18 = ssub.s32 256, 256
      %19 = vsyncadd [#allocation3], %s18
      %s20 = sshll.u32 [#allocation2], 4
      %s21 = int_to_ptr.vmem [resolvable:$true] %s20
      %26 = dma.hbm_to_vmem [thread:$0]  %s0, 256, %s21, [#allocation3], 128, 128, 8
    $region5: #{tpu_custom_call.1} parent=1 // pred_fallthru
      _
    // Predicated region
    $region6: #{tpu_custom_call.1} parent=1 // pred_check
      _
    $region7: #{tpu_custom_call.1} parent=1 // pred_check_branch
      %28 = sbr.rel (0) target = $region9
    $region8: #{tpu_custom_call.1} parent=1 // pred_region
      %s30 = ssub.s32 256, 256
      %31 = vsyncadd [#allocation6], %s30
      %s32 = sshll.u32 [#allocation5], 4
      %s33 = int_to_ptr.vmem [resolvable:$true] %s32
      %38 = dma.hbm_to_vmem [thread:$0]  %s1, 256, %s33, [#allocation6], 128, 128, 8
    $region9: #{tpu_custom_call.1} parent=1 // pred_fallthru
      _
    // Predicated region
    $region10: #{tpu_custom_call.1} parent=1 // pred_check
      _
    $region11: #{tpu_custom_call.1} parent=1 // pred_check_branch
      %40 = sbr.rel (0) target = $region13
    $region12: #{tpu_custom_call.1} parent=1 // pred_region
      %s42 = ssub.s32 6144, 6144
      %43 = vsyncadd [#allocation6], %s42
      %s44 = sshll.u32 [#allocation7], 4
      %s45 = int_to_ptr.vmem [resolvable:$true] %s44
      %50 = dma.hbm_to_vmem [thread:$0]  %s2, 6144, %s45, [#allocation6], 384, 384, 24
    $region13: #{tpu_custom_call.1} parent=1 // pred_fallthru
      _
    // Predicated region
    $region14: #{tpu_custom_call.1} parent=1 // pred_check
      _
    $region15: #{tpu_custom_call.1} parent=1 // pred_check_branch
      %52 = sbr.rel (0) target = $region17
    $region16: #{tpu_custom_call.1} parent=1 // pred_region
      %s54 = ssub.s32 6144, 6144
      %55 = vsyncadd [#allocation9], %s54
      %s56 = sshll.u32 [#allocation8], 4
      %s57 = int_to_ptr.vmem [resolvable:$true] %s56
      %62 = dma.hbm_to_vmem [thread:$0]  %s3, 6144, %s57, [#allocation9], 384, 384, 24
    $region17: #{tpu_custom_call.1} parent=1 // pred_fallthru
      _
    // Predicated region
    $region18: #{tpu_custom_call.1} parent=1 // pred_check
      _
    $region19: #{tpu_custom_call.1} parent=1 // pred_check_branch
      %64 = sbr.rel (0) target = $region21
    $region20: #{tpu_custom_call.1} parent=1 // pred_region
      _
    $region21: #{tpu_custom_call.1} parent=1 // pred_fallthru
      _
    // Predicated region
    $region22: #{tpu_custom_call.1} parent=1 // pred_check
      _
    $region23: #{tpu_custom_call.1} parent=1 // pred_check_branch
      %66 = sbr.rel (0) target = $region25
    $region24: #{tpu_custom_call.1} parent=1 // pred_region
      _
    $region25: #{tpu_custom_call.1} parent=1 // pred_fallthru
      _
    // Predicated region
    $region26: #{tpu_custom_call.1} parent=1 // pred_check
      _
    $region27: #{tpu_custom_call.1} parent=1 // pred_check_branch
      %68 = sbr.rel (0) target = $region29
    $region28: #{tpu_custom_call.1} parent=1 // pred_region
      %69 = dma.done [#allocation3], 256
    $region29: #{tpu_custom_call.1} parent=1 // pred_fallthru
      _
    // Predicated region
    $region30: #{tpu_custom_call.1} parent=1 // pred_check
      _
    $region31: #{tpu_custom_call.1} parent=1 // pred_check_branch
      %71 = sbr.rel (0) target = $region33
    $region32: #{tpu_custom_call.1} parent=1 // pred_region
      %72 = dma.done [#allocation6], 256
    $region33: #{tpu_custom_call.1} parent=1 // pred_fallthru
      _
    // Predicated region
    $region34: #{tpu_custom_call.1} parent=1 // pred_check
      _
    $region35: #{tpu_custom_call.1} parent=1 // pred_check_branch
      %74 = sbr.rel (0) target = $region37
    $region36: #{tpu_custom_call.1} parent=1 // pred_region
      %75 = dma.done [#allocation6], 6144
    $region37: #{tpu_custom_call.1} parent=1 // pred_fallthru
      _
    // Predicated region
    $region38: #{tpu_custom_call.1} parent=1 // pred_check
      _
    $region39: #{tpu_custom_call.1} parent=1 // pred_check_branch
      %77 = sbr.rel (0) target = $region41
    $region40: #{tpu_custom_call.1} parent=1 // pred_region
      %78 = dma.done [#allocation9], 6144
    $region41: #{tpu_custom_call.1} parent=1 // pred_fallthru
      _
    %v79 = vld [vmem:[#allocation2] sm:$0xff]
    %v80 = vld [vmem:[#allocation2 + $0x8] sm:$0xff]
    %v81 = vld [vmem:[#allocation7] sm:$0xff]
    %v82 = vld [vmem:[#allocation7 + $0x8] sm:$0xff]
    %v83 = vld [vmem:[#allocation7 + $0x10] sm:$0xff]
    %v84 = vld [vmem:[#allocation7 + $0x18] sm:$0xff]
    %v85 = vld [vmem:[#allocation7 + $0x20] sm:$0xff]
    %v86 = vld [vmem:[#allocation7 + $0x28] sm:$0xff]
    %v87 = vld [vmem:[#allocation7 + $0x30] sm:$0xff]
    %v88 = vld [vmem:[#allocation7 + $0x38] sm:$0xff]
    %v89 = vld [vmem:[#allocation7 + $0x40] sm:$0xff]
    %v90 = vld [vmem:[#allocation7 + $0x48] sm:$0xff]
    %v91 = vld [vmem:[#allocation7 + $0x50] sm:$0xff]
    %v92 = vld [vmem:[#allocation7 + $0x58] sm:$0xff]
    %v93 = vld [vmem:[#allocation7 + $0x60] sm:$0xff]
    %v94 = vld [vmem:[#allocation7 + $0x68] sm:$0xff]
    %v95 = vld [vmem:[#allocation7 + $0x70] sm:$0xff]
    %v96 = vld [vmem:[#allocation7 + $0x78] sm:$0xff]
    %v97 = vld [vmem:[#allocation7 + $0x80] sm:$0xff]
    %v98 = vld [vmem:[#allocation7 + $0x88] sm:$0xff]
    %v99 = vld [vmem:[#allocation7 + $0x90] sm:$0xff]
    %v100 = vld [vmem:[#allocation7 + $0x98] sm:$0xff]
    %v101 = vld [vmem:[#allocation7 + $0xa0] sm:$0xff]
    %v102 = vld [vmem:[#allocation7 + $0xa8] sm:$0xff]
    %v103 = vld [vmem:[#allocation7 + $0xb0] sm:$0xff]
    %v104 = vld [vmem:[#allocation7 + $0xb8] sm:$0xff]
    %v105 = vld [vmem:[#allocation7 + $0xc0] sm:$0xff]
    %v106 = vld [vmem:[#allocation7 + $0xc8] sm:$0xff]
    %v107 = vld [vmem:[#allocation7 + $0xd0] sm:$0xff]
    %v108 = vld [vmem:[#allocation7 + $0xd8] sm:$0xff]
    %v109 = vld [vmem:[#allocation7 + $0xe0] sm:$0xff]
    %v110 = vld [vmem:[#allocation7 + $0xe8] sm:$0xff]
    %v111 = vld [vmem:[#allocation7 + $0xf0] sm:$0xff]
    %v112 = vld [vmem:[#allocation7 + $0xf8] sm:$0xff]
    %v113 = vld [vmem:[#allocation7 + $0x100] sm:$0xff]
    %v114 = vld [vmem:[#allocation7 + $0x108] sm:$0xff]
    %v115 = vld [vmem:[#allocation7 + $0x110] sm:$0xff]
    %v116 = vld [vmem:[#allocation7 + $0x118] sm:$0xff]
    %v117 = vld [vmem:[#allocation7 + $0x120] sm:$0xff]
    %v118 = vld [vmem:[#allocation7 + $0x128] sm:$0xff]
    %v119 = vld [vmem:[#allocation7 + $0x130] sm:$0xff]
    %v120 = vld [vmem:[#allocation7 + $0x138] sm:$0xff]
    %v121 = vld [vmem:[#allocation7 + $0x140] sm:$0xff]
    %v122 = vld [vmem:[#allocation7 + $0x148] sm:$0xff]
    %v123 = vld [vmem:[#allocation7 + $0x150] sm:$0xff]
    %v124 = vld [vmem:[#allocation7 + $0x158] sm:$0xff]
    %v125 = vld [vmem:[#allocation7 + $0x160] sm:$0xff]
    %v126 = vld [vmem:[#allocation7 + $0x168] sm:$0xff]
    %v127 = vld [vmem:[#allocation7 + $0x170] sm:$0xff]
    %v128 = vld [vmem:[#allocation7 + $0x178] sm:$0xff]
    %v129 = vld [vmem:[%s4] sm:$0x7]
    %v131 = vlaneseq
    %v132 = vshrl.u32 %v131, 7
    %v133 = vsub.s32 0, %v132
    %v134 = vrot.slane %v129, %v133
    %v135 = vlaneseq
    %v136 = vshrl.u32 %v135, 7
    %v137 = vsub.s32 1, %v136
    %v138 = vrot.slane %v129, %v137
    %v139 = vlaneseq
    %v140 = vshrl.u32 %v139, 7
    %v141 = vsub.s32 2, %v140
    %v142 = vrot.slane %v129, %v141
    %146 = vmatprep.subr.mxu0 %v82
    %147 = vmatpush1.msra.mxu0 %v81
    %148 = vmatprep.subr.mxu0 %v85
    %149 = vmatpush1.msra.mxu0 %v84
    %150 = vmatprep.subr.mxu0 %v88
    %151 = vmatpush1.msra.mxu0 %v87
    %152 = vmatprep.subr.mxu0 %v91
    %153 = vmatpush1.msra.mxu0 %v90
    %154 = vmatprep.subr.mxu0 %v94
    %155 = vmatpush1.msra.mxu0 %v93
    %156 = vmatprep.subr.mxu0 %v97
    %157 = vmatpush1.msra.mxu0 %v96
    %158 = vmatprep.subr.mxu0 %v100
    %159 = vmatpush1.msra.mxu0 %v99
    %160 = vmatprep.subr.mxu0 %v103
    %161 = vmatpush1.msra.mxu0 %v102
    %162 = vmatprep.subr.mxu0 %v106
    %163 = vmatpush1.msra.mxu0 %v105
    %164 = vmatprep.subr.mxu0 %v109
    %165 = vmatpush1.msra.mxu0 %v108
    %166 = vmatprep.subr.mxu0 %v112
    %167 = vmatpush1.msra.mxu0 %v111
    %168 = vmatprep.subr.mxu0 %v115
    %169 = vmatpush1.msra.mxu0 %v114
    %170 = vmatprep.subr.mxu0 %v118
    %171 = vmatpush1.msra.mxu0 %v117
    %172 = vmatprep.subr.mxu0 %v121
    %173 = vmatpush1.msra.mxu0 %v120
    %174 = vmatprep.subr.mxu0 %v124
    %175 = vmatpush1.msra.mxu0 %v123
    %176 = vmatprep.subr.mxu0 %v127
    %177 = vmatpush1.msra.mxu0 %v126
    %178 = vmatprep.subr.mxu0 0.0
    %179 = vmatpush1.msra.mxu0 0.0
    %180 = vmatprep.subr.mxu0 0.0
    %181 = vmatpush1.msra.mxu0 0.0
    %182 = vmatprep.subr.mxu0 0.0
    %183 = vmatpush1.msra.mxu0 0.0
    %184 = vmatprep.subr.mxu0 0.0
    %185 = vmatpush1.msra.mxu0 0.0
    %186 = vmatprep.subr.mxu0 0.0
    %187 = vmatpush1.msra.mxu0 0.0
    %188 = vmatprep.subr.mxu0 0.0
    %189 = vmatpush1.msra.mxu0 0.0
    %190 = vmatprep.subr.mxu0 0.0
    %191 = vmatpush1.msra.mxu0 0.0
    %192 = vmatprep.subr.mxu0 0.0
    %193 = vmatpush1.msra.mxu0 0.0
    %194 = vmatprep.subr.mxu0 0.0
    %195 = vmatpush1.msra.mxu0 0.0
    %196 = vmatprep.subr.mxu0 0.0
    %197 = vmatpush1.msra.mxu0 0.0
    %198 = vmatprep.subr.mxu0 0.0
    %199 = vmatpush1.msra.mxu0 0.0
    %200 = vmatprep.subr.mxu0 0.0
    %201 = vmatpush1.msra.mxu0 0.0
    %202 = vmatprep.subr.mxu0 0.0
    %203 = vmatpush1.msra.mxu0 0.0
    %204 = vmatprep.subr.mxu0 0.0
    %205 = vmatpush1.msra.mxu0 0.0
    %206 = vmatprep.subr.mxu0 0.0
    %207 = vmatpush1.msra.mxu0 0.0
    %208 = vmatprep.subr.mxu0 0.0
    %209 = vmatpush1.msra.mxu0 0.0
    %210 = vmatprep.mubr.f32.mxu0 0.0
    %211 = vmatmul.mubr.f32.gmra.mrb[0].mxu0 %v79
    %v212 = vpop.f32.mrb[0].mxu0
    %v213 = vadd.f32 %v134, %v212
    %v214 = vpop.f32.mrb[0].mxu0
    %v215 = vadd.f32 %v138, %v214
    %216 = vmatprep.mubr.f32.mxu0 0.0
    %217 = vmatmul.mubr.f32.gmra.mrb[0].mxu0 %v80
    %v218 = vpop.f32.mrb[0].mxu0
    %v219 = vadd.f32 %v134, %v218
    %v220 = vpop.f32.mrb[0].mxu0
    %v221 = vadd.f32 %v138, %v220
    %222 = vdwg.mxu0
    %223 = vmatprep.subr.mxu0 0.0
    %224 = vmatpush1.msra.mxu0 %v83
    %225 = vmatprep.subr.mxu0 0.0
    %226 = vmatpush1.msra.mxu0 %v86
    %227 = vmatprep.subr.mxu0 0.0
    %228 = vmatpush1.msra.mxu0 %v89
    %229 = vmatprep.subr.mxu0 0.0
    %230 = vmatpush1.msra.mxu0 %v92
    %231 = vmatprep.subr.mxu0 0.0
    %232 = vmatpush1.msra.mxu0 %v95
    %233 = vmatprep.subr.mxu0 0.0
    %234 = vmatpush1.msra.mxu0 %v98
    %235 = vmatprep.subr.mxu0 0.0
    %236 = vmatpush1.msra.mxu0 %v101
    %237 = vmatprep.subr.mxu0 0.0
    %238 = vmatpush1.msra.mxu0 %v104
    %239 = vmatprep.subr.mxu0 0.0
    %240 = vmatpush1.msra.mxu0 %v107
    %241 = vmatprep.subr.mxu0 0.0
    %242 = vmatpush1.msra.mxu0 %v110
    %243 = vmatprep.subr.mxu0 0.0
    %244 = vmatpush1.msra.mxu0 %v113
    %245 = vmatprep.subr.mxu0 0.0
    %246 = vmatpush1.msra.mxu0 %v116
    %247 = vmatprep.subr.mxu0 0.0
    %248 = vmatpush1.msra.mxu0 %v119
    %249 = vmatprep.subr.mxu0 0.0
    %250 = vmatpush1.msra.mxu0 %v122
    %251 = vmatprep.subr.mxu0 0.0
    %252 = vmatpush1.msra.mxu0 %v125
    %253 = vmatprep.subr.mxu0 0.0
    %254 = vmatpush1.msra.mxu0 %v128
    %255 = vmatprep.subr.mxu0 0.0
    %256 = vmatpush1.msra.mxu0 0.0
    %257 = vmatprep.subr.mxu0 0.0
    %258 = vmatpush1.msra.mxu0 0.0
    %259 = vmatprep.subr.mxu0 0.0
    %260 = vmatpush1.msra.mxu0 0.0
    %261 = vmatprep.subr.mxu0 0.0
    %262 = vmatpush1.msra.mxu0 0.0
    %263 = vmatprep.subr.mxu0 0.0
    %264 = vmatpush1.msra.mxu0 0.0
    %265 = vmatprep.subr.mxu0 0.0
    %266 = vmatpush1.msra.mxu0 0.0
    %267 = vmatprep.subr.mxu0 0.0
    %268 = vmatpush1.msra.mxu0 0.0
    %269 = vmatprep.subr.mxu0 0.0
    %270 = vmatpush1.msra.mxu0 0.0
    %271 = vmatprep.subr.mxu0 0.0
    %272 = vmatpush1.msra.mxu0 0.0
    %273 = vmatprep.subr.mxu0 0.0
    %274 = vmatpush1.msra.mxu0 0.0
    %275 = vmatprep.subr.mxu0 0.0
    %276 = vmatpush1.msra.mxu0 0.0
    %277 = vmatprep.subr.mxu0 0.0
    %278 = vmatpush1.msra.mxu0 0.0
    %279 = vmatprep.subr.mxu0 0.0
    %280 = vmatpush1.msra.mxu0 0.0
    %281 = vmatprep.subr.mxu0 0.0
    %282 = vmatpush1.msra.mxu0 0.0
    %283 = vmatprep.subr.mxu0 0.0
    %284 = vmatpush1.msra.mxu0 0.0
    %285 = vmatprep.subr.mxu0 0.0
    %286 = vmatpush1.msra.mxu0 0.0
    %287 = vmatprep.mubr.f32.mxu0 0.0
    %288 = vmatmul.mubr.f32.gmra.mrb[0].mxu0 %v79
    %v289 = vpop.f32.mrb[0].mxu0
    %v290 = vadd.f32 %v142, %v289
    %v291 = vpop.f32.mrb[0].mxu0
    %292 = vmatprep.mubr.f32.mxu0 0.0
    %293 = vmatmul.mubr.f32.gmra.mrb[0].mxu0 %v80
    %v294 = vpop.f32.mrb[0].mxu0
    %v295 = vadd.f32 %v142, %v294
    %v296 = vpop.f32.mrb[0].mxu0
    %297 = vdwg.mxu0
    %v298 = vld [vmem:[#allocation5] sm:$0xff]
    %v299 = vld [vmem:[#allocation5 + $0x8] sm:$0xff]
    %v300 = vld [vmem:[#allocation8] sm:$0xff]
    %v301 = vld [vmem:[#allocation8 + $0x8] sm:$0xff]
    %v302 = vld [vmem:[#allocation8 + $0x10] sm:$0xff]
    %v303 = vld [vmem:[#allocation8 + $0x18] sm:$0xff]
    %v304 = vld [vmem:[#allocation8 + $0x20] sm:$0xff]
    %v305 = vld [vmem:[#allocation8 + $0x28] sm:$0xff]
    %v306 = vld [vmem:[#allocation8 + $0x30] sm:$0xff]
    %v307 = vld [vmem:[#allocation8 + $0x38] sm:$0xff]
    %v308 = vld [vmem:[#allocation8 + $0x40] sm:$0xff]
    %v309 = vld [vmem:[#allocation8 + $0x48] sm:$0xff]
    %v310 = vld [vmem:[#allocation8 + $0x50] sm:$0xff]
    %v311 = vld [vmem:[#allocation8 + $0x58] sm:$0xff]
    %v312 = vld [vmem:[#allocation8 + $0x60] sm:$0xff]
    %v313 = vld [vmem:[#allocation8 + $0x68] sm:$0xff]
    %v314 = vld [vmem:[#allocation8 + $0x70] sm:$0xff]
    %v315 = vld [vmem:[#allocation8 + $0x78] sm:$0xff]
    %v316 = vld [vmem:[#allocation8 + $0x80] sm:$0xff]
    %v317 = vld [vmem:[#allocation8 + $0x88] sm:$0xff]
    %v318 = vld [vmem:[#allocation8 + $0x90] sm:$0xff]
    %v319 = vld [vmem:[#allocation8 + $0x98] sm:$0xff]
    %v320 = vld [vmem:[#allocation8 + $0xa0] sm:$0xff]
    %v321 = vld [vmem:[#allocation8 + $0xa8] sm:$0xff]
    %v322 = vld [vmem:[#allocation8 + $0xb0] sm:$0xff]
    %v323 = vld [vmem:[#allocation8 + $0xb8] sm:$0xff]
    %v324 = vld [vmem:[#allocation8 + $0xc0] sm:$0xff]
    %v325 = vld [vmem:[#allocation8 + $0xc8] sm:$0xff]
    %v326 = vld [vmem:[#allocation8 + $0xd0] sm:$0xff]
    %v327 = vld [vmem:[#allocation8 + $0xd8] sm:$0xff]
    %v328 = vld [vmem:[#allocation8 + $0xe0] sm:$0xff]
    %v329 = vld [vmem:[#allocation8 + $0xe8] sm:$0xff]
    %v330 = vld [vmem:[#allocation8 + $0xf0] sm:$0xff]
    %v331 = vld [vmem:[#allocation8 + $0xf8] sm:$0xff]
    %v332 = vld [vmem:[#allocation8 + $0x100] sm:$0xff]
    %v333 = vld [vmem:[#allocation8 + $0x108] sm:$0xff]
    %v334 = vld [vmem:[#allocation8 + $0x110] sm:$0xff]
    %v335 = vld [vmem:[#allocation8 + $0x118] sm:$0xff]
    %v336 = vld [vmem:[#allocation8 + $0x120] sm:$0xff]
    %v337 = vld [vmem:[#allocation8 + $0x128] sm:$0xff]
    %v338 = vld [vmem:[#allocation8 + $0x130] sm:$0xff]
    %v339 = vld [vmem:[#allocation8 + $0x138] sm:$0xff]
    %v340 = vld [vmem:[#allocation8 + $0x140] sm:$0xff]
    %v341 = vld [vmem:[#allocation8 + $0x148] sm:$0xff]
    %v342 = vld [vmem:[#allocation8 + $0x150] sm:$0xff]
    %v343 = vld [vmem:[#allocation8 + $0x158] sm:$0xff]
    %v344 = vld [vmem:[#allocation8 + $0x160] sm:$0xff]
    %v345 = vld [vmem:[#allocation8 + $0x168] sm:$0xff]
    %v346 = vld [vmem:[#allocation8 + $0x170] sm:$0xff]
    %v347 = vld [vmem:[#allocation8 + $0x178] sm:$0xff]
    %v348 = vld [vmem:[%s5] sm:$0x7]
    %v350 = vlaneseq
    %v351 = vshrl.u32 %v350, 7
    %v352 = vsub.s32 0, %v351
    %v353 = vrot.slane %v348, %v352
    %v354 = vlaneseq
    %v355 = vshrl.u32 %v354, 7
    %v356 = vsub.s32 1, %v355
    %v357 = vrot.slane %v348, %v356
    %v358 = vlaneseq
    %v359 = vshrl.u32 %v358, 7
    %v360 = vsub.s32 2, %v359
    %v361 = vrot.slane %v348, %v360
    %365 = vmatprep.subr.mxu0 %v301
    %366 = vmatpush1.msra.mxu0 %v300
    %367 = vmatprep.subr.mxu0 %v304
    %368 = vmatpush1.msra.mxu0 %v303
    %369 = vmatprep.subr.mxu0 %v307
    %370 = vmatpush1.msra.mxu0 %v306
    %371 = vmatprep.subr.mxu0 %v310
    %372 = vmatpush1.msra.mxu0 %v309
    %373 = vmatprep.subr.mxu0 %v313
    %374 = vmatpush1.msra.mxu0 %v312
    %375 = vmatprep.subr.mxu0 %v316
    %376 = vmatpush1.msra.mxu0 %v315
    %377 = vmatprep.subr.mxu0 %v319
    %378 = vmatpush1.msra.mxu0 %v318
    %379 = vmatprep.subr.mxu0 %v322
    %380 = vmatpush1.msra.mxu0 %v321
    %381 = vmatprep.subr.mxu0 %v325
    %382 = vmatpush1.msra.mxu0 %v324
    %383 = vmatprep.subr.mxu0 %v328
    %384 = vmatpush1.msra.mxu0 %v327
    %385 = vmatprep.subr.mxu0 %v331
    %386 = vmatpush1.msra.mxu0 %v330
    %387 = vmatprep.subr.mxu0 %v334
    %388 = vmatpush1.msra.mxu0 %v333
    %389 = vmatprep.subr.mxu0 %v337
    %390 = vmatpush1.msra.mxu0 %v336
    %391 = vmatprep.subr.mxu0 %v340
    %392 = vmatpush1.msra.mxu0 %v339
    %393 = vmatprep.subr.mxu0 %v343
    %394 = vmatpush1.msra.mxu0 %v342
    %395 = vmatprep.subr.mxu0 %v346
    %396 = vmatpush1.msra.mxu0 %v345
    %397 = vmatprep.subr.mxu0 0.0
    %398 = vmatpush1.msra.mxu0 0.0
    %399 = vmatprep.subr.mxu0 0.0
    %400 = vmatpush1.msra.mxu0 0.0
    %401 = vmatprep.subr.mxu0 0.0
    %402 = vmatpush1.msra.mxu0 0.0
    %403 = vmatprep.subr.mxu0 0.0
    %404 = vmatpush1.msra.mxu0 0.0
    %405 = vmatprep.subr.mxu0 0.0
    %406 = vmatpush1.msra.mxu0 0.0
    %407 = vmatprep.subr.mxu0 0.0
    %408 = vmatpush1.msra.mxu0 0.0
    %409 = vmatprep.subr.mxu0 0.0
    %410 = vmatpush1.msra.mxu0 0.0
    %411 = vmatprep.subr.mxu0 0.0
    %412 = vmatpush1.msra.mxu0 0.0
    %413 = vmatprep.subr.mxu0 0.0
    %414 = vmatpush1.msra.mxu0 0.0
    %415 = vmatprep.subr.mxu0 0.0
    %416 = vmatpush1.msra.mxu0 0.0
    %417 = vmatprep.subr.mxu0 0.0
    %418 = vmatpush1.msra.mxu0 0.0
    %419 = vmatprep.subr.mxu0 0.0
    %420 = vmatpush1.msra.mxu0 0.0
    %421 = vmatprep.subr.mxu0 0.0
    %422 = vmatpush1.msra.mxu0 0.0
    %423 = vmatprep.subr.mxu0 0.0
    %424 = vmatpush1.msra.mxu0 0.0
    %425 = vmatprep.subr.mxu0 0.0
    %426 = vmatpush1.msra.mxu0 0.0
    %427 = vmatprep.subr.mxu0 0.0
    %428 = vmatpush1.msra.mxu0 0.0
    %429 = vmatprep.mubr.f32.mxu0 0.0
    %430 = vmatmul.mubr.f32.gmra.mrb[0].mxu0 %v298
    %v431 = vpop.f32.mrb[0].mxu0
    %v432 = vadd.f32 %v353, %v431
    %v433 = vpop.f32.mrb[0].mxu0
    %v434 = vadd.f32 %v357, %v433
    %435 = vmatprep.mubr.f32.mxu0 0.0
    %436 = vmatmul.mubr.f32.gmra.mrb[0].mxu0 %v299
    %v437 = vpop.f32.mrb[0].mxu0
    %v438 = vadd.f32 %v353, %v437
    %v439 = vpop.f32.mrb[0].mxu0
    %v440 = vadd.f32 %v357, %v439
    %441 = vdwg.mxu0
    %442 = vmatprep.subr.mxu0 0.0
    %443 = vmatpush1.msra.mxu0 %v302
    %444 = vmatprep.subr.mxu0 0.0
    %445 = vmatpush1.msra.mxu0 %v305
    %446 = vmatprep.subr.mxu0 0.0
    %447 = vmatpush1.msra.mxu0 %v308
    %448 = vmatprep.subr.mxu0 0.0
    %449 = vmatpush1.msra.mxu0 %v311
    %450 = vmatprep.subr.mxu0 0.0
    %451 = vmatpush1.msra.mxu0 %v314
    %452 = vmatprep.subr.mxu0 0.0
    %453 = vmatpush1.msra.mxu0 %v317
    %454 = vmatprep.subr.mxu0 0.0
    %455 = vmatpush1.msra.mxu0 %v320
    %456 = vmatprep.subr.mxu0 0.0
    %457 = vmatpush1.msra.mxu0 %v323
    %458 = vmatprep.subr.mxu0 0.0
    %459 = vmatpush1.msra.mxu0 %v326
    %460 = vmatprep.subr.mxu0 0.0
    %461 = vmatpush1.msra.mxu0 %v329
    %462 = vmatprep.subr.mxu0 0.0
    %463 = vmatpush1.msra.mxu0 %v332
    %464 = vmatprep.subr.mxu0 0.0
    %465 = vmatpush1.msra.mxu0 %v335
    %466 = vmatprep.subr.mxu0 0.0
    %467 = vmatpush1.msra.mxu0 %v338
    %468 = vmatprep.subr.mxu0 0.0
    %469 = vmatpush1.msra.mxu0 %v341
    %470 = vmatprep.subr.mxu0 0.0
    %471 = vmatpush1.msra.mxu0 %v344
    %472 = vmatprep.subr.mxu0 0.0
    %473 = vmatpush1.msra.mxu0 %v347
    %474 = vmatprep.subr.mxu0 0.0
    %475 = vmatpush1.msra.mxu0 0.0
    %476 = vmatprep.subr.mxu0 0.0
    %477 = vmatpush1.msra.mxu0 0.0
    %478 = vmatprep.subr.mxu0 0.0
    %479 = vmatpush1.msra.mxu0 0.0
    %480 = vmatprep.subr.mxu0 0.0
    %481 = vmatpush1.msra.mxu0 0.0
    %482 = vmatprep.subr.mxu0 0.0
    %483 = vmatpush1.msra.mxu0 0.0
    %484 = vmatprep.subr.mxu0 0.0
    %485 = vmatpush1.msra.mxu0 0.0
    %486 = vmatprep.subr.mxu0 0.0
    %487 = vmatpush1.msra.mxu0 0.0
    %488 = vmatprep.subr.mxu0 0.0
    %489 = vmatpush1.msra.mxu0 0.0
    %490 = vmatprep.subr.mxu0 0.0
    %491 = vmatpush1.msra.mxu0 0.0
    %492 = vmatprep.subr.mxu0 0.0
    %493 = vmatpush1.msra.mxu0 0.0
    %494 = vmatprep.subr.mxu0 0.0
    %495 = vmatpush1.msra.mxu0 0.0
    %496 = vmatprep.subr.mxu0 0.0
    %497 = vmatpush1.msra.mxu0 0.0
    %498 = vmatprep.subr.mxu0 0.0
    %499 = vmatpush1.msra.mxu0 0.0
    %500 = vmatprep.subr.mxu0 0.0
    %501 = vmatpush1.msra.mxu0 0.0
    %502 = vmatprep.subr.mxu0 0.0
    %503 = vmatpush1.msra.mxu0 0.0
    %504 = vmatprep.subr.mxu0 0.0
    %505 = vmatpush1.msra.mxu0 0.0
    %506 = vmatprep.mubr.f32.mxu0 0.0
    %507 = vmatmul.mubr.f32.gmra.mrb[0].mxu0 %v298
    %v508 = vpop.f32.mrb[0].mxu0
    %v509 = vadd.f32 %v361, %v508
    %v510 = vpop.f32.mrb[0].mxu0
    %511 = vmatprep.mubr.f32.mxu0 0.0
    %512 = vmatmul.mubr.f32.gmra.mrb[0].mxu0 %v299
    %v513 = vpop.f32.mrb[0].mxu0
    %v514 = vadd.f32 %v361, %v513
    %v515 = vpop.f32.mrb[0].mxu0
    %516 = vdwg.mxu0
    %v517 = vadd.f32 %v213, %v432
    %v518 = vadd.f32 %v215, %v434
    %v519 = vadd.f32 %v219, %v438
    %v520 = vadd.f32 %v221, %v440
    %v521 = vxor.u32 %v517, 2147483648
    %v522 = vxor.u32 %v518, 2147483648
    %v523 = vxor.u32 %v519, 2147483648
    %v524 = vxor.u32 %v520, 2147483648
    %v525 = vmul.f32 %v521, 1.442695
    %v526 = vpow.pop %v525
    %v527 = vmul.f32 %v522, 1.442695
    %v528 = vpow.pop %v527
    %v529 = vmul.f32 %v523, 1.442695
    %v530 = vpow.pop %v529
    %v531 = vmul.f32 %v524, 1.442695
    %v532 = vpow.pop %v531
    %v533 = vadd.f32 %v526, 1.0
    %v534 = vadd.f32 %v528, 1.0
    %v535 = vadd.f32 %v530, 1.0
    %v536 = vadd.f32 %v532, 1.0
    %v537 = vrcp.pop %v533
    %v538 = vmul.f32 1.0, %v537
    %v539 = vrcp.pop %v534
    %v540 = vmul.f32 1.0, %v539
    %v541 = vrcp.pop %v535
    %v542 = vmul.f32 1.0, %v541
    %v543 = vrcp.pop %v536
    %v544 = vmul.f32 1.0, %v543
    %v545 = vmul.f32 %v538, %v509
    %v546 = vmul.f32 %v542, %v514
    %v547 = vadd.f32 %v290, %v545
    %v548 = vadd.f32 %v295, %v546
    %v549 = vtanh.pop %v547
    %v550 = vtanh.pop %v548
    %s551 = smul.u32 0, 128
    %s552 = sshra.s32 %s551, 7
    %s553 = sand.u32 %s551, 127
    %s554 = scalar_lea.vmem [#allocation5], %s552
    %v555 = vld [vmem:[%s554] sm:$0xff]
    %v556 = vld [vmem:[%s554 + $0x8] sm:$0xff]
    %v557 = vsub.f32 %v555, %v549
    %v558 = vsub.f32 %v556, %v550
    %v559 = vmul.f32 %v540, %v557
    %v560 = vmul.f32 %v544, %v558
    %v561 = vadd.f32 %v549, %v559
    %v562 = vadd.f32 %v550, %v560
    %563 = vst [vmem:[#allocation10] sm:$0xff] %v561
    %564 = vst [vmem:[#allocation10 + $0x8] sm:$0xff] %v562
    // Predicated region
    $region42: #{tpu_custom_call.1} parent=1 // pred_check
      _
    $region43: #{tpu_custom_call.1} parent=1 // pred_check_branch
      %566 = sbr.rel (0) target = $region45
    $region44: #{tpu_custom_call.1} parent=1 // pred_region
      %s568 = ssub.s32 256, 256
      %569 = vsyncadd [#allocation4], %s568
      %s570 = sshll.u32 [#allocation10], 4
      %s571 = int_to_ptr.vmem [resolvable:$true] %s570
      %576 = dma.vmem_to_hbm [thread:$0]  %s571, 256, %s6, [#allocation4], 128, 128, 8
    $region45: #{tpu_custom_call.1} parent=1 // pred_fallthru
      _
    // Predicated region
    $region46: #{tpu_custom_call.1} parent=1 // pred_check
      _
    $region47: #{tpu_custom_call.1} parent=1 // pred_check_branch
      %578 = sbr.rel (0) target = $region49
    $region48: #{tpu_custom_call.1} parent=1 // pred_region
      %579 = dma.done [#allocation4], 256
    $region49: #{tpu_custom_call.1} parent=1 // pred_fallthru
      _
    %580 = vsyncpa [#allocation3], 1
    %581 = vsyncpa [#allocation6], 1
    %582 = vsyncpa [#allocation9], 1
    %583 = vsyncpa [#allocation4], 1

</llo_original>
